<compile_context>
chip_gen: v5e
topology: v5e:2x2
jax: 0.10.0
libtpu: 0.0.40
codegen_flags: <defaults>
</compile_context>

<pallas_src>
import jax
import jax.numpy as jnp
from jax import lax
from jax.experimental import pallas as pl
from jax.experimental.pallas import tpu as pltpu


def _round_up(x, m):
    return (x + m - 1) // m * m


def _vmem_budget_bytes():
    """Generation-aware scoped-VMEM budget (per TensorCore)."""
    phys = None
    try:
        info = pltpu.get_tpu_info()
        phys = int(getattr(info, "vmem_capacity_bytes", 0)) or None
    except Exception:
        phys = None
    if phys is None:
        phys = 64 << 20            # conservative default (v7x per-TC size)
    if phys <= (64 << 20):
        return 40 << 20            # v7x: leave headroom out of 64 MiB / TC
    return 80 << 20                # v5e / v6e: 128 MiB physical VMEM


def _choose_block_rows(Z, K, N, x_isz, o_isz, avail_bytes, min_tm):
    """Largest power-of-two row tile <= 2048 whose streaming working set
    (double-buffered x/out blocks + f32 accumulator) fits the remaining
    VMEM budget after the resident weights."""
    tm = 2048
    while tm > min_tm and (2 * tm * K * x_isz + 2 * tm * N * o_isz + tm * N * 4) > avail_bytes:
        tm //= 2
    tm = max(tm, min_tm)
    return min(tm, _round_up(max(Z, min_tm), min_tm))


def _indexed_linear_kernel(g_lo_ref, g_hi_ref, off_ref, x_ref, w_ref, o_ref, acc_ref):
    """One row tile: out = x @ W[group(row)], ragged group boundaries allowed.

    g_lo_ref / g_hi_ref : SMEM (n_tiles,) first/last group id present in tile
    off_ref             : SMEM (C+1,) cumulative row offsets per group
    x_ref               : (TM, K) feature tile
    w_ref               : (C, K, N) full block-diagonal, coeff-scaled weights
    o_ref               : (TM, N)
    acc_ref             : (TM, N) f32 scratch accumulator (boundary tiles only)
    """
    t = pl.program_id(0)
    g_lo = g_lo_ref[t]
    g_hi = g_hi_ref[t]
    x = x_ref[...]
    tm = x_ref.shape[0]

    @pl.when(g_lo == g_hi)
    def _single_group():
        # Fast path: every (valid) row of this tile belongs to one group.
        o_ref[...] = jnp.dot(
            x, w_ref[g_lo], preferred_element_type=jnp.float32
        ).astype(o_ref.dtype)

    @pl.when(g_lo != g_hi)
    def _boundary_tile():
        # Tile straddles >= 1 group boundary: masked accumulation per group.
        rows = t * tm + lax.broadcasted_iota(jnp.int32, (tm, 1), 0)
        zero = jnp.zeros_like(x)
        acc_ref[...] = jnp.zeros_like(acc_ref)

        def body(g, carry):
            start = off_ref[g]
            end = off_ref[g + 1]
            mask = (rows >= start) & (rows < end)
            xm = jnp.where(mask, x, zero)
            acc_ref[...] += jnp.dot(xm, w_ref[g], preferred_element_type=jnp.float32)
            return carry

        lax.fori_loop(g_lo, g_hi + 1, body, 0)
        o_ref[...] = acc_ref[...].astype(o_ref.dtype)


def indexed_linear_pallas(w_full, x, counts, *, block_rows=None, compute_dtype=None):
    """out[z, :] = x[z, :] @ w_full[group(z)]   (ragged grouped / indexed matmul).

    w_full  : (C, K, N) fused, coefficient-scaled weights (N multiple of 128)
    x       : (Z, K) features (rows contiguous per group)
    counts  : (C,) int rows per group (sum(counts) == Z, nondecreasing groups)
    """
    Z, K = x.shape
    C, Kw, N = w_full.shape
    assert K == Kw
    assert N % 128 == 0

    out_dtype = x.dtype
    if compute_dtype is not None:
        x = x.astype(compute_dtype)
        w_full = w_full.astype(compute_dtype)
    x_isz = jnp.dtype(x.dtype).itemsize
    w_isz = jnp.dtype(w_full.dtype).itemsize
    o_isz = jnp.dtype(out_dtype).itemsize
    # bf16 / sub-32-bit minimum sublane tile is 16.
    min_tm = 16 if min(x_isz, w_isz) < 4 else 8

    budget = _vmem_budget_bytes()
    w_res_bytes = C * K * N * w_isz  # resident weights (single-buffered)

    if block_rows is not None:
        tm = _round_up(max(int(block_rows), min_tm), min_tm)
    else:
        avail = budget - w_res_bytes - (4 << 20)
        tm = _choose_block_rows(Z, K, N, x_isz, o_isz, avail, min_tm)
    n_tiles = int(pl.cdiv(Z, tm))

    # Scalar-prefetched tile metadata (tiny device-side computation).
    ends = jnp.cumsum(counts.astype(jnp.int32))
    offsets = jnp.concatenate([jnp.zeros((1,), jnp.int32), ends])        # (C+1,)
    starts = jnp.arange(n_tiles, dtype=jnp.int32) * tm
    lasts = jnp.minimum(starts + (tm - 1), Z - 1)
    tile_g_lo = jnp.minimum(
        jnp.searchsorted(ends, starts, side="right"), C - 1).astype(jnp.int32)
    tile_g_hi = jnp.minimum(
        jnp.searchsorted(ends, lasts, side="right"), C - 1).astype(jnp.int32)

    def run(single_buffer_weights):
        w_bufs = 1 if single_buffer_weights else 2
        est_vmem = (w_bufs * w_res_bytes
                    + 2 * tm * K * x_isz + 2 * tm * N * o_isz + tm * N * 4)
        vmem_limit = int(max(min(max(est_vmem + (4 << 20), 16 << 20), budget),
                             est_vmem + (2 << 20)))

        w_idx = lambda t, lo, hi, off: (0, 0, 0)
        w_spec = pl.BlockSpec((C, K, N), w_idx)
        if single_buffer_weights and hasattr(pl, "Buffered"):
            try:
                w_spec = pl.BlockSpec((C, K, N), w_idx, pipeline_mode=pl.Buffered(1))
            except TypeError:
                w_spec = pl.BlockSpec((C, K, N), w_idx)

        return pl.pallas_call(
            _indexed_linear_kernel,
            out_shape=jax.ShapeDtypeStruct((Z, N), out_dtype),
            grid_spec=pltpu.PrefetchScalarGridSpec(
                num_scalar_prefetch=3,
                grid=(n_tiles,),
                in_specs=[
                    pl.BlockSpec((tm, K), lambda t, lo, hi, off: (t, 0)),  # x tile
                    w_spec,                                                # resident W
                ],
                out_specs=pl.BlockSpec((tm, N), lambda t, lo, hi, off: (t, 0)),
                scratch_shapes=[pltpu.VMEM((tm, N), jnp.float32)],
            ),
            compiler_params=pltpu.CompilerParams(
                dimension_semantics=("parallel",),
                vmem_limit_bytes=vmem_limit,
            ),
        )(tile_g_lo, tile_g_hi, offsets, x, w_full)

    try:
        return run(True)
    except Exception:
        # Fallback if this jax version rejects Buffered(1) on a pallas_call
        # operand: retry with default double-buffered weights.
        return run(False)


class IndexedLinear:
    """JAX/Pallas port of cuequivariance_torch IndexedLinear (common case)."""

    def __init__(self, segment_specs, coefficients):
        # segment_specs: list of (u_s, v_s) -- one path per output segment
        # coefficients : list of float     -- path coefficients (descriptor buffer)
        assert len(segment_specs) == len(coefficients)
        self.segment_specs = list(segment_specs)
        self.coefficients = [float(c) for c in coefficients]
        self.weight_dim = sum(u * v for u, v in self.segment_specs)
        self.in_dim = sum(u for u, _ in self.segment_specs)
        self.out_dim = sum(v for _, v in self.segment_specs)
        # Pad the fused output width to a multiple of 128 lanes (unmasked stores).
        self.out_pad = _round_up(self.out_dim, 128)

    def _fused_weight(self, input1):
        """Block-diagonal (C, in_dim, out_pad) weight with coefficients folded in."""
        C = input1.shape[0]
        w_full = jnp.zeros((C, self.in_dim, self.out_pad), dtype=input1.dtype)
        w_off = i_off = o_off = 0
        for (u, v), coeff in zip(self.segment_specs, self.coefficients):
            blk = (coeff * input1[:, w_off:w_off + u * v]).reshape(C, u, v)
            w_full = w_full.at[:, i_off:i_off + u, o_off:o_off + v].set(
                blk.astype(input1.dtype))
            w_off += u * v
            i_off += u
            o_off += v
        return w_full

    def __call__(self, input1, input2, out_shape, counts, *,
                 block_rows=None, compute_dtype=None):
        # input1: (C, weight_dim), input2: (Z, in_dim), counts: (C,) int,
        # assumes sum(counts) == Z and rows of input2 are contiguous per group.
        w_full = self._fused_weight(input1)
        out = indexed_linear_pallas(
            w_full, input2, counts,
            block_rows=block_rows, compute_dtype=compute_dtype)
        if self.out_pad != self.out_dim:
            out = out[:, : self.out_dim]
        return out


def _reference(input1, input2, counts, segment_specs, coefficients):
    Z = input2.shape[0]
    C = input1.shape[0]
    ends = jnp.cumsum(counts)
    row_gid = jnp.minimum(
        jnp.searchsorted(ends, jnp.arange(Z), side="right"), C - 1)
    outs = []
    w_off = i_off = 0
    for (u, v), coeff in zip(segment_specs, coefficients):
        w = input1[:, w_off:w_off + u * v].reshape(C, u, v)
        x = input2[:, i_off:i_off + u]
        outs.append(coeff * jnp.einsum("zu,zuv->zv", x, w[row_gid]))
        w_off += u * v
        i_off += u
    return jnp.concatenate(outs, axis=-1)


if __name__ == "__main__":
    key = jax.random.PRNGKey(0)
    k1, k2, k3, k4 = jax.random.split(key, 4)

    # Descriptor: 2 output segments / paths, 3 weight groups.
    segment_specs = [(16, 32), (8, 16)]     # (u_s, v_s)
    coefficients = [1.0, 0.5]
    mod = IndexedLinear(segment_specs, coefficients)

    # Config 1: ragged counts (not multiples of 8), Z not a multiple of the row tile.
    C, Z = 3, 60
    counts = jnp.array([23, 19, 18], dtype=jnp.int32)   # sum == Z
    input1 = jax.random.normal(k1, (C, mod.weight_dim), dtype=jnp.float32)
    input2 = jax.random.normal(k2, (Z, mod.in_dim), dtype=jnp.float32)
    out = jax.block_until_ready(mod(input1, input2, (Z, mod.out_dim), counts))
    ref = _reference(input1, input2, counts, segment_specs, coefficients)
    assert out.shape == (Z, mod.out_dim), (out.shape, (Z, mod.out_dim))
    assert jnp.allclose(out, ref, atol=1e-4, rtol=1e-4), "config 1 mismatch"

    # Config 2: several row tiles -> mix of single-group and boundary tiles.
    C2, Z2 = 3, 160
    counts2 = jnp.array([70, 40, 50], dtype=jnp.int32)  # sum == Z2
    input1b = jax.random.normal(k3, (C2, mod.weight_dim), dtype=jnp.float32)
    input2b = jax.random.normal(k4, (Z2, mod.in_dim), dtype=jnp.float32)
    out2 = jax.block_until_ready(
        mod(input1b, input2b, (Z2, mod.out_dim), counts2, block_rows=32))
    ref2 = _reference(input1b, input2b, counts2, segment_specs, coefficients)
    assert out2.shape == (Z2, mod.out_dim)
    assert jnp.allclose(out2, ref2, atol=1e-4, rtol=1e-4), "config 2 mismatch"

    # Config 2 with bf16 MXU feed (f32 accumulation) -- looser tolerance.
    out3 = jax.block_until_ready(
        mod(input1b, input2b, (Z2, mod.out_dim), counts2,
            block_rows=32, compute_dtype=jnp.bfloat16))
    assert out3.shape == (Z2, mod.out_dim)
    assert jnp.allclose(out3, ref2, atol=0.3, rtol=0.1), "bf16 config mismatch"

    print("KERNEL_OK")
</pallas_src>

<mosaic_0001>
module attributes {stable_mosaic.version = 11 : i64} {
  func.func @_indexed_linear_kernel(%arg0: i32, %arg1: memref<1xi32, #tpu.memory_space<smem>>, %arg2: memref<1xi32, #tpu.memory_space<smem>>, %arg3: memref<4xi32, #tpu.memory_space<smem>>, %arg4: memref<64x24xf32, #tpu.memory_space<vmem>>, %arg5: memref<3x24x128xf32, #tpu.memory_space<vmem>>, %arg6: memref<64x128xf32, #tpu.memory_space<vmem>>, %arg7: memref<64x128xf32, #tpu.memory_space<vmem>>) attributes {dimension_semantics = [#tpu.dimension_semantics<parallel>], iteration_bounds = array<i64: 1>, scalar_prefetch = 3 : i64, scratch_operands = 1 : i64, tpu.core_type = #tpu.core_type<tc>, window_params = [{transform_indices = @transform_0, window_bounds = array<i64: 64, 24>}, {pipeline_mode = #tpu.pipeline_mode<synchronous>, transform_indices = @transform_1, window_bounds = array<i64: 3, 24, 128>}, {transform_indices = @transform_2, window_bounds = array<i64: 64, 128>}]} {
    %0 = arith.index_cast %arg0 : i32 to index
    %1 = memref.load %arg1[%0] : memref<1xi32, #tpu.memory_space<smem>>
    %2 = arith.index_cast %arg0 : i32 to index
    %3 = memref.load %arg2[%2] : memref<1xi32, #tpu.memory_space<smem>>
    %c0 = arith.constant 0 : index
    %c0_0 = arith.constant 0 : index
    %4 = vector.load %arg4[%c0, %c0_0] : memref<64x24xf32, #tpu.memory_space<vmem>>, vector<64x24xf32>
    %5 = arith.cmpi eq, %1, %3 : i32
    %6 = arith.extui %5 : i1 to i32
    %c0_i32 = arith.constant 0 : i32
    %7 = arith.cmpi ne, %6, %c0_i32 : i32
    scf.if %7 {
      %11 = arith.index_cast %1 : i32 to index
      %c0_2 = arith.constant 0 : index
      %c0_3 = arith.constant 0 : index
      %12 = vector.load %arg5[%11, %c0_2, %c0_3] : memref<3x24x128xf32, #tpu.memory_space<vmem>>, vector<1x24x128xf32>
      %13 = vector.shape_cast %12 : vector<1x24x128xf32> to vector<24x128xf32>
      %cst = arith.constant dense<0.000000e+00> : vector<64x128xf32>
      %14 = tpu.matmul %4, %13, %cst {dimension_numbers = #tpu.dot_dimension_numbers<[1], [0], [0], [1], [0, 0, 1, 1], [], []>} : vector<64x24xf32>, vector<24x128xf32>, vector<64x128xf32> -> vector<64x128xf32>
      %c0_4 = arith.constant 0 : index
      %c0_5 = arith.constant 0 : index
      %15 = vector.load %arg6[%c0_4, %c0_5] : memref<64x128xf32, #tpu.memory_space<vmem>>, vector<64x128xf32>
      tpu.vector_store %arg6[%c0_4, %c0_5], %14 {strides = array<i32>} : memref<64x128xf32, #tpu.memory_space<vmem>>, vector<64x128xf32>,
    } else {
    }
    %8 = arith.cmpi ne, %1, %3 : i32
    %9 = arith.extui %8 : i1 to i32
    %c0_i32_1 = arith.constant 0 : i32
    %10 = arith.cmpi ne, %9, %c0_i32_1 : i32
    scf.if %10 {
      %c64_i32 = arith.constant 64 : i32
      %11 = arith.muli %arg0, %c64_i32 : i32
      %12 = tpu.iota {dimensions = array<i32: 0>} : vector<64x1xi32>
      %13 = vector.broadcast %11 : i32 to vector<64x1xi32>
      %14 = arith.addi %13, %12 : vector<64x1xi32>
      %cst = arith.constant 0.000000e+00 : f32
      %15 = vector.broadcast %cst : f32 to vector<64x24xf32>
      %cst_2 = arith.constant 0.000000e+00 : f32
      %16 = vector.broadcast %cst_2 : f32 to vector<64x128xf32>
      %c0_3 = arith.constant 0 : index
      %c0_4 = arith.constant 0 : index
      %17 = vector.load %arg7[%c0_3, %c0_4] : memref<64x128xf32, #tpu.memory_space<vmem>>, vector<64x128xf32>
      tpu.vector_store %arg7[%c0_3, %c0_4], %16 {strides = array<i32>} : memref<64x128xf32, #tpu.memory_space<vmem>>, vector<64x128xf32>,
      %c1_i32 = arith.constant 1 : i32
      %18 = arith.addi %3, %c1_i32 : i32
      %c0_i32_5 = arith.constant 0 : i32
      %19 = arith.subi %18, %1 : i32
      %20 = arith.addi %1, %19 : i32
      %c1_i32_6 = arith.constant 1 : i32
      scf.for %arg8 = %1 to %20 step %c1_i32_6  : i32 {
        %23 = arith.index_cast %arg8 : i32 to index
        %24 = memref.load %arg3[%23] : memref<4xi32, #tpu.memory_space<smem>>
        %c1_i32_11 = arith.constant 1 : i32
        %25 = arith.addi %arg8, %c1_i32_11 : i32
        %26 = arith.index_cast %25 : i32 to index
        %27 = memref.load %arg3[%26] : memref<4xi32, #tpu.memory_space<smem>>
        %28 = vector.broadcast %24 : i32 to vector<64x1xi32>
        %29 = arith.cmpi sge, %14, %28 : vector<64x1xi32>
        %30 = vector.broadcast %27 : i32 to vector<64x1xi32>
        %31 = arith.cmpi slt, %14, %30 : vector<64x1xi32>
        %32 = arith.andi %29, %31 : vector<64x1xi1>
        %33 = vector.shape_cast %32 : vector<64x1xi1> to vector<64x1xi1>
        %34 = vector.broadcast %33 : vector<64x1xi1> to vector<64x24xi1>
        %35 = arith.select %34, %4, %15 : vector<64x24xi1>, vector<64x24xf32>
        %c0_12 = arith.constant 0 : index
        %c0_13 = arith.constant 0 : index
        %36 = vector.load %arg7[%c0_12, %c0_13] : memref<64x128xf32, #tpu.memory_space<vmem>>, vector<64x128xf32>
        %37 = arith.index_cast %arg8 : i32 to index
        %c0_14 = arith.constant 0 : index
        %c0_15 = arith.constant 0 : index
        %38 = vector.load %arg5[%37, %c0_14, %c0_15] : memref<3x24x128xf32, #tpu.memory_space<vmem>>, vector<1x24x128xf32>
        %39 = vector.shape_cast %38 : vector<1x24x128xf32> to vector<24x128xf32>
        %cst_16 = arith.constant dense<0.000000e+00> : vector<64x128xf32>
        %40 = tpu.matmul %35, %39, %cst_16 {dimension_numbers = #tpu.dot_dimension_numbers<[1], [0], [0], [1], [0, 0, 1, 1], [], []>} : vector<64x24xf32>, vector<24x128xf32>, vector<64x128xf32> -> vector<64x128xf32>
        %41 = arith.addf %36, %40 : vector<64x128xf32>
        %c0_17 = arith.constant 0 : index
        %c0_18 = arith.constant 0 : index
        %42 = vector.load %arg7[%c0_17, %c0_18] : memref<64x128xf32, #tpu.memory_space<vmem>>, vector<64x128xf32>
        tpu.vector_store %arg7[%c0_17, %c0_18], %41 {strides = array<i32>} : memref<64x128xf32, #tpu.memory_space<vmem>>, vector<64x128xf32>,
      }
      %c0_7 = arith.constant 0 : index
      %c0_8 = arith.constant 0 : index
      %21 = vector.load %arg7[%c0_7, %c0_8] : memref<64x128xf32, #tpu.memory_space<vmem>>, vector<64x128xf32>
      %c0_9 = arith.constant 0 : index
      %c0_10 = arith.constant 0 : index
      %22 = vector.load %arg6[%c0_9, %c0_10] : memref<64x128xf32, #tpu.memory_space<vmem>>, vector<64x128xf32>
      tpu.vector_store %arg6[%c0_9, %c0_10], %21 {strides = array<i32>} : memref<64x128xf32, #tpu.memory_space<vmem>>, vector<64x128xf32>,
    } else {
    }
    return
  }
  func.func @transform_0(%arg0: i32, %arg1: memref<1xi32, #tpu.memory_space<smem>>, %arg2: memref<1xi32, #tpu.memory_space<smem>>, %arg3: memref<4xi32, #tpu.memory_space<smem>>) -> (i32, i32) {
    %c0_i32 = arith.constant 0 : i32
    %c0_i32_0 = arith.constant 0 : i32
    return %arg0, %c0_i32 : i32, i32
  }
  func.func @transform_1(%arg0: i32, %arg1: memref<1xi32, #tpu.memory_space<smem>>, %arg2: memref<1xi32, #tpu.memory_space<smem>>, %arg3: memref<4xi32, #tpu.memory_space<smem>>) -> (i32, i32, i32) {
    %c0_i32 = arith.constant 0 : i32
    %c0_i32_0 = arith.constant 0 : i32
    %c0_i32_1 = arith.constant 0 : i32
    %c0_i32_2 = arith.constant 0 : i32
    return %c0_i32, %c0_i32_0, %c0_i32_1 : i32, i32, i32
  }
  func.func @transform_2(%arg0: i32, %arg1: memref<1xi32, #tpu.memory_space<smem>>, %arg2: memref<1xi32, #tpu.memory_space<smem>>, %arg3: memref<4xi32, #tpu.memory_space<smem>>) -> (i32, i32) {
    %c0_i32 = arith.constant 0 : i32
    %c0_i32_0 = arith.constant 0 : i32
    return %arg0, %c0_i32 : i32, i32
  }
}

module attributes {stable_mosaic.version = 11 : i64} {
  func.func @_indexed_linear_kernel(%arg0: i32, %arg1: memref<1xi32, #tpu.memory_space<smem>>, %arg2: memref<1xi32, #tpu.memory_space<smem>>, %arg3: memref<4xi32, #tpu.memory_space<smem>>, %arg4: memref<64x24xf32, #tpu.memory_space<vmem>>, %arg5: memref<3x24x128xf32, #tpu.memory_space<vmem>>, %arg6: memref<64x128xf32, #tpu.memory_space<vmem>>, %arg7: memref<64x128xf32, #tpu.memory_space<vmem>>) attributes {dimension_semantics = [#tpu.dimension_semantics<parallel>], iteration_bounds = array<i64: 1>, scalar_prefetch = 3 : i64, scratch_operands = 1 : i64, tpu.core_type = #tpu.core_type<tc>, window_params = [{transform_indices = @transform_0, window_bounds = array<i64: 64, 24>}, {pipeline_mode = #tpu.pipeline_mode<synchronous>, transform_indices = @transform_1, window_bounds = array<i64: 3, 24, 128>}, {transform_indices = @transform_2, window_bounds = array<i64: 64, 128>}]} {
    %0 = arith.index_cast %arg0 : i32 to index
    %1 = memref.load %arg1[%0] : memref<1xi32, #tpu.memory_space<smem>>
    %2 = arith.index_cast %arg0 : i32 to index
    %3 = memref.load %arg2[%2] : memref<1xi32, #tpu.memory_space<smem>>
    %c0 = arith.constant 0 : index
    %c0_0 = arith.constant 0 : index
    %4 = vector.load %arg4[%c0, %c0_0] : memref<64x24xf32, #tpu.memory_space<vmem>>, vector<64x24xf32>
    %5 = arith.cmpi eq, %1, %3 : i32
    %6 = arith.extui %5 : i1 to i32
    %c0_i32 = arith.constant 0 : i32
    %7 = arith.cmpi ne, %6, %c0_i32 : i32
    scf.if %7 {
      %11 = arith.index_cast %1 : i32 to index
      %c0_2 = arith.constant 0 : index
      %c0_3 = arith.constant 0 : index
      %12 = vector.load %arg5[%11, %c0_2, %c0_3] : memref<3x24x128xf32, #tpu.memory_space<vmem>>, vector<1x24x128xf32>
      %13 = vector.shape_cast %12 : vector<1x24x128xf32> to vector<24x128xf32>
      %cst = arith.constant dense<0.000000e+00> : vector<64x128xf32>
      %14 = tpu.matmul %4, %13, %cst {dimension_numbers = #tpu.dot_dimension_numbers<[1], [0], [0], [1], [0, 0, 1, 1], [], []>} : vector<64x24xf32>, vector<24x128xf32>, vector<64x128xf32> -> vector<64x128xf32>
      %c0_4 = arith.constant 0 : index
      %c0_5 = arith.constant 0 : index
      %15 = vector.load %arg6[%c0_4, %c0_5] : memref<64x128xf32, #tpu.memory_space<vmem>>, vector<64x128xf32>
      tpu.vector_store %arg6[%c0_4, %c0_5], %14 {strides = array<i32>} : memref<64x128xf32, #tpu.memory_space<vmem>>, vector<64x128xf32>,
    } else {
    }
    %8 = arith.cmpi ne, %1, %3 : i32
    %9 = arith.extui %8 : i1 to i32
    %c0_i32_1 = arith.constant 0 : i32
    %10 = arith.cmpi ne, %9, %c0_i32_1 : i32
    scf.if %10 {
      %c64_i32 = arith.constant 64 : i32
      %11 = arith.muli %arg0, %c64_i32 : i32
      %12 = tpu.iota {dimensions = array<i32: 0>} : vector<64x1xi32>
      %13 = vector.broadcast %11 : i32 to vector<64x1xi32>
      %14 = arith.addi %13, %12 : vector<64x1xi32>
      %cst = arith.constant 0.000000e+00 : f32
      %15 = vector.broadcast %cst : f32 to vector<64x24xf32>
      %cst_2 = arith.constant 0.000000e+00 : f32
      %16 = vector.broadcast %cst_2 : f32 to vector<64x128xf32>
      %c0_3 = arith.constant 0 : index
      %c0_4 = arith.constant 0 : index
      %17 = vector.load %arg7[%c0_3, %c0_4] : memref<64x128xf32, #tpu.memory_space<vmem>>, vector<64x128xf32>
      tpu.vector_store %arg7[%c0_3, %c0_4], %16 {strides = array<i32>} : memref<64x128xf32, #tpu.memory_space<vmem>>, vector<64x128xf32>,
      %c1_i32 = arith.constant 1 : i32
      %18 = arith.addi %3, %c1_i32 : i32
      %c0_i32_5 = arith.constant 0 : i32
      %19 = arith.subi %18, %1 : i32
      %20 = arith.addi %1, %19 : i32
      %c1_i32_6 = arith.constant 1 : i32
      scf.for %arg8 = %1 to %20 step %c1_i32_6  : i32 {
        %23 = arith.index_cast %arg8 : i32 to index
        %24 = memref.load %arg3[%23] : memref<4xi32, #tpu.memory_space<smem>>
        %c1_i32_11 = arith.constant 1 : i32
        %25 = arith.addi %arg8, %c1_i32_11 : i32
        %26 = arith.index_cast %25 : i32 to index
        %27 = memref.load %arg3[%26] : memref<4xi32, #tpu.memory_space<smem>>
        %28 = vector.broadcast %24 : i32 to vector<64x1xi32>
        %29 = arith.cmpi sge, %14, %28 : vector<64x1xi32>
        %30 = vector.broadcast %27 : i32 to vector<64x1xi32>
        %31 = arith.cmpi slt, %14, %30 : vector<64x1xi32>
        %32 = arith.andi %29, %31 : vector<64x1xi1>
        %33 = vector.shape_cast %32 : vector<64x1xi1> to vector<64x1xi1>
        %34 = vector.broadcast %33 : vector<64x1xi1> to vector<64x24xi1>
        %35 = arith.select %34, %4, %15 : vector<64x24xi1>, vector<64x24xf32>
        %c0_12 = arith.constant 0 : index
        %c0_13 = arith.constant 0 : index
        %36 = vector.load %arg7[%c0_12, %c0_13] : memref<64x128xf32, #tpu.memory_space<vmem>>, vector<64x128xf32>
        %37 = arith.index_cast %arg8 : i32 to index
        %c0_14 = arith.constant 0 : index
        %c0_15 = arith.constant 0 : index
        %38 = vector.load %arg5[%37, %c0_14, %c0_15] : memref<3x24x128xf32, #tpu.memory_space<vmem>>, vector<1x24x128xf32>
        %39 = vector.shape_cast %38 : vector<1x24x128xf32> to vector<24x128xf32>
        %cst_16 = arith.constant dense<0.000000e+00> : vector<64x128xf32>
        %40 = tpu.matmul %35, %39, %cst_16 {dimension_numbers = #tpu.dot_dimension_numbers<[1], [0], [0], [1], [0, 0, 1, 1], [], []>} : vector<64x24xf32>, vector<24x128xf32>, vector<64x128xf32> -> vector<64x128xf32>
        %41 = arith.addf %36, %40 : vector<64x128xf32>
        %c0_17 = arith.constant 0 : index
        %c0_18 = arith.constant 0 : index
        %42 = vector.load %arg7[%c0_17, %c0_18] : memref<64x128xf32, #tpu.memory_space<vmem>>, vector<64x128xf32>
        tpu.vector_store %arg7[%c0_17, %c0_18], %41 {strides = array<i32>} : memref<64x128xf32, #tpu.memory_space<vmem>>, vector<64x128xf32>,
      }
      %c0_7 = arith.constant 0 : index
      %c0_8 = arith.constant 0 : index
      %21 = vector.load %arg7[%c0_7, %c0_8] : memref<64x128xf32, #tpu.memory_space<vmem>>, vector<64x128xf32>
      %c0_9 = arith.constant 0 : index
      %c0_10 = arith.constant 0 : index
      %22 = vector.load %arg6[%c0_9, %c0_10] : memref<64x128xf32, #tpu.memory_space<vmem>>, vector<64x128xf32>
      tpu.vector_store %arg6[%c0_9, %c0_10], %21 {strides = array<i32>} : memref<64x128xf32, #tpu.memory_space<vmem>>, vector<64x128xf32>,
    } else {
    }
    return
  }
  func.func @transform_0(%arg0: i32, %arg1: memref<1xi32, #tpu.memory_space<smem>>, %arg2: memref<1xi32, #tpu.memory_space<smem>>, %arg3: memref<4xi32, #tpu.memory_space<smem>>) -> (i32, i32) {
    %c0_i32 = arith.constant 0 : i32
    %c0_i32_0 = arith.constant 0 : i32
    return %arg0, %c0_i32 : i32, i32
  }
  func.func @transform_1(%arg0: i32, %arg1: memref<1xi32, #tpu.memory_space<smem>>, %arg2: memref<1xi32, #tpu.memory_space<smem>>, %arg3: memref<4xi32, #tpu.memory_space<smem>>) -> (i32, i32, i32) {
    %c0_i32 = arith.constant 0 : i32
    %c0_i32_0 = arith.constant 0 : i32
    %c0_i32_1 = arith.constant 0 : i32
    %c0_i32_2 = arith.constant 0 : i32
    return %c0_i32, %c0_i32_0, %c0_i32_1 : i32, i32, i32
  }
  func.func @transform_2(%arg0: i32, %arg1: memref<1xi32, #tpu.memory_space<smem>>, %arg2: memref<1xi32, #tpu.memory_space<smem>>, %arg3: memref<4xi32, #tpu.memory_space<smem>>) -> (i32, i32) {
    %c0_i32 = arith.constant 0 : i32
    %c0_i32_0 = arith.constant 0 : i32
    return %arg0, %c0_i32 : i32, i32
  }
}

</mosaic_0001>

<llo_original>
// kernel: tpu_custom_call.1
$region0: #{tpu_custom_call.1}
  #allocation0 [shape = 'u32[]', space=smem, size = 0x4, offset = 0x4, fixed_abs, tag = 'smem constant byte address 0x4 - core index']
  #allocation1 [shape = 'u32[72,128]{1,0:T(1,128)}', space=vmem, size = 0x9000, scoped, tag = 'internal scratch']
  #allocation2 [shape = 'f32[64,128]{1,0:T(8,128)}', space=vmem, size = 0x8000, scoped, tag = 'scratch operand']
  #allocation3 [shape = 's32[1]{0}', space=sflag, size = 0x4, scoped, tag = 'scoped memory for tpu_custom_call.1']
  #allocation4 [shape = 's32[1]{0:T(128)S(6)}', space=smem, size = 0x200, scoped, tag = 'prefetched SMEM operand 0']
  #allocation5 [shape = 's32[1]{0:T(128)S(6)}', space=smem, size = 0x200, scoped, tag = 'prefetched SMEM operand 1']
  #allocation6 [shape = 'u8[512]{0}', space=smem, size = 0x200, scoped, tag = 'prefetched SMEM operand 2']
  %s0 = inlined_call_operand.<no memory space> [shape: s32[1], index: 0, kind: input, shape index: {}]
  %s1 = inlined_call_operand.<no memory space> [shape: s32[1], index: 1, kind: input, shape index: {}]
  %s2 = inlined_call_operand.vmem [shape: s32[4], index: 2, kind: input, shape index: {}]
  %s3 = inlined_call_operand.vmem [shape: f32[60,24], index: 3, kind: input, shape index: {}]
  %s4 = inlined_call_operand.vmem [shape: f32[3,24,128], index: 4, kind: input, shape index: {}]
  %s5 = inlined_call_operand.hbm [shape: f32[60,128], index: 5, kind: output, shape index: {}]
  %s6 = sld [smem:[#allocation0]]
  $region33: #{tpu_custom_call.1} parent=0
    _
  %s8 = ssub.s32 1, %s6
  %s9 = scalar_select 0, %s8, %s6
  %10 = sst [smem:[#allocation4]] %s0
  %11 = sst [smem:[#allocation5]] %s1
  %s13 = sshll.u32 %s2, 4
  %s14 = int_to_ptr.vmem [resolvable:$true] %s13
  %16 = dma.vmem_to_smem %s14, 16, [#allocation6], [#allocation3]
  %18 = dma.done [#allocation3], 16
  %19 = sfence
  $region1: #{tpu_custom_call.1} parent=0
    #allocation7 [shape = 'u8[32768]{0}', space=vmem, size = 0x8000, scoped, tag = 'output window, operand 0, single buffered']
    #allocation8 [shape = 's32[1]{0}', space=sflag, size = 0x4, scoped, tag = 'scoped memory for tpu_custom_call.1']
    %20 = vsyncpa [#allocation8], 0
    // Predicated region
    $region2: #{tpu_custom_call.1} parent=1 // pred_check
      _
    $region3: #{tpu_custom_call.1} parent=1 // pred_check_branch
      %22 = sbr.rel (0) target = $region5
    $region4: #{tpu_custom_call.1} parent=1 // pred_region
      _
    $region5: #{tpu_custom_call.1} parent=1 // pred_fallthru
      _
    // Predicated region
    $region6: #{tpu_custom_call.1} parent=1 // pred_check
      _
    $region7: #{tpu_custom_call.1} parent=1 // pred_check_branch
      %24 = sbr.rel (0) target = $region9
    $region8: #{tpu_custom_call.1} parent=1 // pred_region
      _
    $region9: #{tpu_custom_call.1} parent=1 // pred_fallthru
      _
    %s25 = sld [smem:[#allocation4]]
    %s26 = sld [smem:[#allocation5]]
    %v27 = vld [vmem:[%s3] sm:$0xff]
    %v28 = vld [vmem:[%s3 + $0x8] sm:$0xff]
    %v29 = vld [vmem:[%s3 + $0x10] sm:$0xff]
    %v30 = vld [vmem:[%s3 + $0x18] sm:$0xff]
    %v31 = vld [vmem:[%s3 + $0x20] sm:$0xff]
    %v32 = vld [vmem:[%s3 + $0x28] sm:$0xff]
    %v33 = vld [vmem:[%s3 + $0x30] sm:$0xff]
    %v34 = vld [vmem:[%s3 + $0x38] sm:$0xff]
    %p35 = scmp.eq.s32.totalorder %s25, %s26
    // Predicated region
    $region10: #{tpu_custom_call.1} parent=1 // pred_check
      %p36 = pneg %p35
    $region11: #{tpu_custom_call.1} parent=1 // pred_check_branch
      %38 = sbr.rel (%p36) target = $region13
    $region12: #{tpu_custom_call.1} parent=1 // pred_region
      %s39 = smul.u32 %s25, 24
      %s40 = scalar_lea.vmem %s4, %s39
      %v41 = vld [vmem:[%s40] sm:$0xff]
      %v42 = vld [vmem:[%s40 + $0x8] sm:$0xff]
      %v43 = vld [vmem:[%s40 + $0x10] sm:$0xff]
      %vm44 = vcmask 195584
      %v46 = vsel %vm44, %v27, 0
      %v49 = vsel %vm44, %v28, 0
      %v52 = vsel %vm44, %v29, 0
      %v55 = vsel %vm44, %v30, 0
      %v58 = vsel %vm44, %v31, 0
      %v61 = vsel %vm44, %v32, 0
      %v64 = vsel %vm44, %v33, 0
      %v67 = vsel %vm44, %v34, 0
      %69 = vmatpush.msra.mxu0 0.0
      %70 = vmatpush.msra.mxu0 0.0
      %71 = vmatpush.msra.mxu0 0.0
      %72 = vmatpush.msra.mxu0 0.0
      %73 = vmatpush.msra.mxu0 0.0
      %74 = vmatpush.msra.mxu0 0.0
      %75 = vmatpush.msra.mxu0 0.0
      %76 = vmatpush.msra.mxu0 0.0
      %77 = vmatpush.msra.mxu0 0.0
      %78 = vmatpush.msra.mxu0 0.0
      %79 = vmatpush.msra.mxu0 0.0
      %80 = vmatpush.msra.mxu0 0.0
      %81 = vmatpush.msra.mxu0 0.0
      %82 = vmatpush.msra.mxu0 %v43
      %83 = vmatpush.msra.mxu0 %v42
      %84 = vmatpush.msra.mxu0 %v41
      %85 = vmatmul.f32.gmra.mxu0 %v46
      %v86 = vpop.f32.mrf.mxu0
      %v87 = vadd.f32 0.0, %v86
      %88 = vmatmul.f32.gmra.mxu0 %v49
      %v89 = vpop.f32.mrf.mxu0
      %v90 = vadd.f32 0.0, %v89
      %91 = vmatmul.f32.gmra.mxu0 %v52
      %v92 = vpop.f32.mrf.mxu0
      %v93 = vadd.f32 0.0, %v92
      %94 = vmatmul.f32.gmra.mxu0 %v55
      %v95 = vpop.f32.mrf.mxu0
      %v96 = vadd.f32 0.0, %v95
      %97 = vmatmul.f32.gmra.mxu0 %v58
      %v98 = vpop.f32.mrf.mxu0
      %v99 = vadd.f32 0.0, %v98
      %100 = vmatmul.f32.gmra.mxu0 %v61
      %v101 = vpop.f32.mrf.mxu0
      %v102 = vadd.f32 0.0, %v101
      %103 = vmatmul.f32.gmra.mxu0 %v64
      %v104 = vpop.f32.mrf.mxu0
      %v105 = vadd.f32 0.0, %v104
      %106 = vmatmul.f32.gmra.mxu0 %v67
      %v107 = vpop.f32.mrf.mxu0
      %v108 = vadd.f32 0.0, %v107
      %109 = vdwg.mxu0
      %110 = vst [vmem:[#allocation7] sm:$0xff] %v87
      %111 = vst [vmem:[#allocation7 + $0x8] sm:$0xff] %v90
      %112 = vst [vmem:[#allocation7 + $0x10] sm:$0xff] %v93
      %113 = vst [vmem:[#allocation7 + $0x18] sm:$0xff] %v96
      %114 = vst [vmem:[#allocation7 + $0x20] sm:$0xff] %v99
      %115 = vst [vmem:[#allocation7 + $0x28] sm:$0xff] %v102
      %116 = vst [vmem:[#allocation7 + $0x30] sm:$0xff] %v105
      %117 = vst [vmem:[#allocation7 + $0x38] sm:$0xff] %v108
    $region13: #{tpu_custom_call.1} parent=1 // pred_fallthru
      _
    %p118 = scmp.ne.s32.totalorder %s25, %s26
    // Predicated region
    $region14: #{tpu_custom_call.1} parent=1 // pred_check
      %p119 = pneg %p118
    $region15: #{tpu_custom_call.1} parent=1 // pred_check_branch
      %121 = sbr.rel (%p119) target = $region17
    $region16: #{tpu_custom_call.1} parent=1 // pred_region
      %s122 = smul.u32 0, 64
      %v123 = vlaneseq
      %v124 = vshrl.u32 %v123, 7
      %v125 = vadd.s32 %v124, 8
      %v126 = vadd.s32 %v124, 16
      %v127 = vadd.s32 %v124, 24
      %v128 = vadd.s32 %v124, 32
      %v129 = vadd.s32 %v124, 40
      %v130 = vadd.s32 %v124, 48
      %v131 = vadd.s32 %v124, 56
      %v132 = vstv %s122
      %v133 = vadd.s32 %v132, %v124
      %v134 = vadd.s32 %v132, %v125
      %v135 = vadd.s32 %v132, %v126
      %v136 = vadd.s32 %v132, %v127
      %v137 = vadd.s32 %v132, %v128
      %v138 = vadd.s32 %v132, %v129
      %v139 = vadd.s32 %v132, %v130
      %v140 = vadd.s32 %v132, %v131
      %141 = vst [vmem:[#allocation2] sm:$0xff] 0.0
      %142 = vst [vmem:[#allocation2 + $0x8] sm:$0xff] 0.0
      %143 = vst [vmem:[#allocation2 + $0x10] sm:$0xff] 0.0
      %144 = vst [vmem:[#allocation2 + $0x18] sm:$0xff] 0.0
      %145 = vst [vmem:[#allocation2 + $0x20] sm:$0xff] 0.0
      %146 = vst [vmem:[#allocation2 + $0x28] sm:$0xff] 0.0
      %147 = vst [vmem:[#allocation2 + $0x30] sm:$0xff] 0.0
      %148 = vst [vmem:[#allocation2 + $0x38] sm:$0xff] 0.0
      %s149 = sadd.s32 %s26, 1
      // While loop
      $region18: #{tpu_custom_call.1} parent=16 // loop_pre_header
        _
      $region19: #{tpu_custom_call.1} parent=16 // loop_header
        %s151 = sphi %s25, %s153
        %p152 = scmp.ge.s32.totalorder %s151, %s149
      $region20: #{tpu_custom_call.1} parent=16 // loop_header_branch
        %155 = sbr.rel (%p152) target = $region24
      $region21: #{tpu_custom_call.1} parent=16 // loop_body
        %s156 = sld [smem:[#allocation6 + %s151]]
        %s157 = sadd.s32 %s151, 1
        %s158 = sld [smem:[#allocation6 + %s157]]
        %v159 = vstv %s156
        %vm160 = vcmp.ge.s32.totalorder %v133, %v159
        %vm161 = vcmp.ge.s32.totalorder %v134, %v159
        %vm162 = vcmp.ge.s32.totalorder %v135, %v159
        %vm163 = vcmp.ge.s32.totalorder %v136, %v159
        %vm164 = vcmp.ge.s32.totalorder %v137, %v159
        %vm165 = vcmp.ge.s32.totalorder %v138, %v159
        %vm166 = vcmp.ge.s32.totalorder %v139, %v159
        %vm167 = vcmp.ge.s32.totalorder %v140, %v159
        %v168 = vstv %s158
        %vm169 = vcmp.lt.s32.totalorder %v133, %v168
        %vm170 = vcmp.lt.s32.totalorder %v134, %v168
        %vm171 = vcmp.lt.s32.totalorder %v135, %v168
        %vm172 = vcmp.lt.s32.totalorder %v136, %v168
        %vm173 = vcmp.lt.s32.totalorder %v137, %v168
        %vm174 = vcmp.lt.s32.totalorder %v138, %v168
        %vm175 = vcmp.lt.s32.totalorder %v139, %v168
        %vm176 = vcmp.lt.s32.totalorder %v140, %v168
        %vm177 = vmand %vm160, %vm169
        %vm178 = vmand %vm161, %vm170
        %vm179 = vmand %vm162, %vm171
        %vm180 = vmand %vm163, %vm172
        %vm181 = vmand %vm164, %vm173
        %vm182 = vmand %vm165, %vm174
        %vm183 = vmand %vm166, %vm175
        %vm184 = vmand %vm167, %vm176
        %v185 = vsel %vm177, 1, 0
        %v186 = vsel %vm178, 1, 0
        %v187 = vsel %vm179, 1, 0
        %v188 = vsel %vm180, 1, 0
        %v189 = vsel %vm181, 1, 0
        %v190 = vsel %vm182, 1, 0
        %v191 = vsel %vm183, 1, 0
        %v192 = vsel %vm184, 1, 0
        %vm193 = vcmp.eq.s32.totalorder %v185, 1
        %vm194 = vcmp.eq.s32.totalorder %v186, 1
        %vm195 = vcmp.eq.s32.totalorder %v187, 1
        %vm196 = vcmp.eq.s32.totalorder %v188, 1
        %vm197 = vcmp.eq.s32.totalorder %v189, 1
        %vm198 = vcmp.eq.s32.totalorder %v190, 1
        %vm199 = vcmp.eq.s32.totalorder %v191, 1
        %vm200 = vcmp.eq.s32.totalorder %v192, 1
        %v201 = vsel %vm193, %v27, 0.0
        %v202 = vsel %vm194, %v28, 0.0
        %v203 = vsel %vm195, %v29, 0.0
        %v204 = vsel %vm196, %v30, 0.0
        %v205 = vsel %vm197, %v31, 0.0
        %v206 = vsel %vm198, %v32, 0.0
        %v207 = vsel %vm199, %v33, 0.0
        %v208 = vsel %vm200, %v34, 0.0
        %v209 = vld [vmem:[#allocation2] sm:$0xff]
        %v210 = vld [vmem:[#allocation2 + $0x8] sm:$0xff]
        %v211 = vld [vmem:[#allocation2 + $0x10] sm:$0xff]
        %v212 = vld [vmem:[#allocation2 + $0x18] sm:$0xff]
        %v213 = vld [vmem:[#allocation2 + $0x20] sm:$0xff]
        %v214 = vld [vmem:[#allocation2 + $0x28] sm:$0xff]
        %v215 = vld [vmem:[#allocation2 + $0x30] sm:$0xff]
        %v216 = vld [vmem:[#allocation2 + $0x38] sm:$0xff]
        %s217 = smul.u32 %s151, 24
        %s218 = scalar_lea.vmem %s4, %s217
        %v219 = vld [vmem:[%s218] sm:$0xff]
        %v220 = vld [vmem:[%s218 + $0x8] sm:$0xff]
        %v221 = vld [vmem:[%s218 + $0x10] sm:$0xff]
        %vm222 = vcmask 195584
        %v224 = vsel %vm222, %v201, 0
        %v227 = vsel %vm222, %v202, 0
        %v230 = vsel %vm222, %v203, 0
        %v233 = vsel %vm222, %v204, 0
        %v236 = vsel %vm222, %v205, 0
        %v239 = vsel %vm222, %v206, 0
        %v242 = vsel %vm222, %v207, 0
        %v245 = vsel %vm222, %v208, 0
        %247 = vmatpush.msra.mxu0 0.0
        %248 = vmatpush.msra.mxu0 0.0
        %249 = vmatpush.msra.mxu0 0.0
        %250 = vmatpush.msra.mxu0 0.0
        %251 = vmatpush.msra.mxu0 0.0
        %252 = vmatpush.msra.mxu0 0.0
        %253 = vmatpush.msra.mxu0 0.0
        %254 = vmatpush.msra.mxu0 0.0
        %255 = vmatpush.msra.mxu0 0.0
        %256 = vmatpush.msra.mxu0 0.0
        %257 = vmatpush.msra.mxu0 0.0
        %258 = vmatpush.msra.mxu0 0.0
        %259 = vmatpush.msra.mxu0 0.0
        %260 = vmatpush.msra.mxu0 %v221
        %261 = vmatpush.msra.mxu0 %v220
        %262 = vmatpush.msra.mxu0 %v219
        %263 = vmatmul.f32.gmra.mxu0 %v224
        %v264 = vpop.f32.mrf.mxu0
        %v265 = vadd.f32 0.0, %v264
        %266 = vmatmul.f32.gmra.mxu0 %v227
        %v267 = vpop.f32.mrf.mxu0
        %v268 = vadd.f32 0.0, %v267
        %269 = vmatmul.f32.gmra.mxu0 %v230
        %v270 = vpop.f32.mrf.mxu0
        %v271 = vadd.f32 0.0, %v270
        %272 = vmatmul.f32.gmra.mxu0 %v233
        %v273 = vpop.f32.mrf.mxu0
        %v274 = vadd.f32 0.0, %v273
        %275 = vmatmul.f32.gmra.mxu0 %v236
        %v276 = vpop.f32.mrf.mxu0
        %v277 = vadd.f32 0.0, %v276
        %278 = vmatmul.f32.gmra.mxu0 %v239
        %v279 = vpop.f32.mrf.mxu0
        %v280 = vadd.f32 0.0, %v279
        %281 = vmatmul.f32.gmra.mxu0 %v242
        %v282 = vpop.f32.mrf.mxu0
        %v283 = vadd.f32 0.0, %v282
        %284 = vmatmul.f32.gmra.mxu0 %v245
        %v285 = vpop.f32.mrf.mxu0
        %v286 = vadd.f32 0.0, %v285
        %287 = vdwg.mxu0
        %v288 = vadd.f32 %v209, %v265
        %v289 = vadd.f32 %v210, %v268
        %v290 = vadd.f32 %v211, %v271
        %v291 = vadd.f32 %v212, %v274
        %v292 = vadd.f32 %v213, %v277
        %v293 = vadd.f32 %v214, %v280
        %v294 = vadd.f32 %v215, %v283
        %v295 = vadd.f32 %v216, %v286
        %296 = vst [vmem:[#allocation2] sm:$0xff] %v288
        %297 = vst [vmem:[#allocation2 + $0x8] sm:$0xff] %v289
        %298 = vst [vmem:[#allocation2 + $0x10] sm:$0xff] %v290
        %299 = vst [vmem:[#allocation2 + $0x18] sm:$0xff] %v291
        %300 = vst [vmem:[#allocation2 + $0x20] sm:$0xff] %v292
        %301 = vst [vmem:[#allocation2 + $0x28] sm:$0xff] %v293
        %302 = vst [vmem:[#allocation2 + $0x30] sm:$0xff] %v294
        %303 = vst [vmem:[#allocation2 + $0x38] sm:$0xff] %v295
      $region22: #{tpu_custom_call.1} parent=16 // loop_footer
        %s153 = sadd.s32 %s151, 1
      $region23: #{tpu_custom_call.1} parent=16 // loop_footer_branch
        %150 = sbr.rel target = $region19
      $region24: #{tpu_custom_call.1} parent=16 // loop_exit
        _
      %v304 = vld [vmem:[#allocation2] sm:$0xff]
      %v305 = vld [vmem:[#allocation2 + $0x8] sm:$0xff]
      %v306 = vld [vmem:[#allocation2 + $0x10] sm:$0xff]
      %v307 = vld [vmem:[#allocation2 + $0x18] sm:$0xff]
      %v308 = vld [vmem:[#allocation2 + $0x20] sm:$0xff]
      %v309 = vld [vmem:[#allocation2 + $0x28] sm:$0xff]
      %v310 = vld [vmem:[#allocation2 + $0x30] sm:$0xff]
      %v311 = vld [vmem:[#allocation2 + $0x38] sm:$0xff]
      %312 = vst [vmem:[#allocation7] sm:$0xff] %v304
      %313 = vst [vmem:[#allocation7 + $0x8] sm:$0xff] %v305
      %314 = vst [vmem:[#allocation7 + $0x10] sm:$0xff] %v306
      %315 = vst [vmem:[#allocation7 + $0x18] sm:$0xff] %v307
      %316 = vst [vmem:[#allocation7 + $0x20] sm:$0xff] %v308
      %317 = vst [vmem:[#allocation7 + $0x28] sm:$0xff] %v309
      %318 = vst [vmem:[#allocation7 + $0x30] sm:$0xff] %v310
      %319 = vst [vmem:[#allocation7 + $0x38] sm:$0xff] %v311
    $region17: #{tpu_custom_call.1} parent=1 // pred_fallthru
      _
    // Predicated region
    $region25: #{tpu_custom_call.1} parent=1 // pred_check
      _
    $region26: #{tpu_custom_call.1} parent=1 // pred_check_branch
      %321 = sbr.rel (0) target = $region28
    $region27: #{tpu_custom_call.1} parent=1 // pred_region
      %323 = vsyncadd [#allocation8], 0
      %s324 = sshll.u32 [#allocation7], 4
      %s325 = int_to_ptr.vmem [resolvable:$true] %s324
      %s326 = sshll.u32 %s5, 4
      %s327 = int_to_ptr.hbm [resolvable:$true] %s326
      %332 = dma.vmem_to_hbm [thread:$0]  %s325, 1024, %s327, [#allocation8], 128, 128, 8
    $region28: #{tpu_custom_call.1} parent=1 // pred_fallthru
      _
    // Predicated region
    $region29: #{tpu_custom_call.1} parent=1 // pred_check
      _
    $region30: #{tpu_custom_call.1} parent=1 // pred_check_branch
      %334 = sbr.rel (0) target = $region32
    $region31: #{tpu_custom_call.1} parent=1 // pred_region
      %336 = dma.done [#allocation8], 1024
    $region32: #{tpu_custom_call.1} parent=1 // pred_fallthru
      _
    %337 = vsyncpa [#allocation8], 1

// kernel: tpu_custom_call.1
$region0: #{tpu_custom_call.1}
  #allocation0 [shape = 'u32[]', space=smem, size = 0x4, offset = 0x4, fixed_abs, tag = 'smem constant byte address 0x4 - core index']
  #allocation1 [shape = 'u32[72,128]{1,0:T(1,128)}', space=vmem, size = 0x9000, scoped, tag = 'internal scratch']
  #allocation2 [shape = 'f32[64,128]{1,0:T(8,128)}', space=vmem, size = 0x8000, scoped, tag = 'scratch operand']
  #allocation3 [shape = 's32[1]{0}', space=sflag, size = 0x4, scoped, tag = 'scoped memory for tpu_custom_call.1']
  #allocation4 [shape = 's32[1]{0:T(128)S(6)}', space=smem, size = 0x200, scoped, tag = 'prefetched SMEM operand 0']
  #allocation5 [shape = 's32[1]{0:T(128)S(6)}', space=smem, size = 0x200, scoped, tag = 'prefetched SMEM operand 1']
  #allocation6 [shape = 'u8[512]{0}', space=smem, size = 0x200, scoped, tag = 'prefetched SMEM operand 2']
  %s0 = inlined_call_operand.<no memory space> [shape: s32[1], index: 0, kind: input, shape index: {}]
  %s1 = inlined_call_operand.<no memory space> [shape: s32[1], index: 1, kind: input, shape index: {}]
  %s2 = inlined_call_operand.vmem [shape: s32[4], index: 2, kind: input, shape index: {}]
  %s3 = inlined_call_operand.vmem [shape: f32[60,24], index: 3, kind: input, shape index: {}]
  %s4 = inlined_call_operand.vmem [shape: f32[3,24,128], index: 4, kind: input, shape index: {}]
  %s5 = inlined_call_operand.hbm [shape: f32[60,128], index: 5, kind: output, shape index: {}]
  %s6 = sld [smem:[#allocation0]]
  $region33: #{tpu_custom_call.1} parent=0
    _
  %s8 = ssub.s32 1, %s6
  %s9 = scalar_select 0, %s8, %s6
  %10 = sst [smem:[#allocation4]] %s0
  %11 = sst [smem:[#allocation5]] %s1
  %s13 = sshll.u32 %s2, 4
  %s14 = int_to_ptr.vmem [resolvable:$true] %s13
  %16 = dma.vmem_to_smem %s14, 16, [#allocation6], [#allocation3]
  %18 = dma.done [#allocation3], 16
  %19 = sfence
  $region1: #{tpu_custom_call.1} parent=0
    #allocation7 [shape = 'u8[32768]{0}', space=vmem, size = 0x8000, scoped, tag = 'output window, operand 0, single buffered']
    #allocation8 [shape = 's32[1]{0}', space=sflag, size = 0x4, scoped, tag = 'scoped memory for tpu_custom_call.1']
    %20 = vsyncpa [#allocation8], 0
    // Predicated region
    $region2: #{tpu_custom_call.1} parent=1 // pred_check
      _
    $region3: #{tpu_custom_call.1} parent=1 // pred_check_branch
      %22 = sbr.rel (0) target = $region5
    $region4: #{tpu_custom_call.1} parent=1 // pred_region
      _
    $region5: #{tpu_custom_call.1} parent=1 // pred_fallthru
      _
    // Predicated region
    $region6: #{tpu_custom_call.1} parent=1 // pred_check
      _
    $region7: #{tpu_custom_call.1} parent=1 // pred_check_branch
      %24 = sbr.rel (0) target = $region9
    $region8: #{tpu_custom_call.1} parent=1 // pred_region
      _
    $region9: #{tpu_custom_call.1} parent=1 // pred_fallthru
      _
    %s25 = sld [smem:[#allocation4]]
    %s26 = sld [smem:[#allocation5]]
    %v27 = vld [vmem:[%s3] sm:$0xff]
    %v28 = vld [vmem:[%s3 + $0x8] sm:$0xff]
    %v29 = vld [vmem:[%s3 + $0x10] sm:$0xff]
    %v30 = vld [vmem:[%s3 + $0x18] sm:$0xff]
    %v31 = vld [vmem:[%s3 + $0x20] sm:$0xff]
    %v32 = vld [vmem:[%s3 + $0x28] sm:$0xff]
    %v33 = vld [vmem:[%s3 + $0x30] sm:$0xff]
    %v34 = vld [vmem:[%s3 + $0x38] sm:$0xff]
    %p35 = scmp.eq.s32.totalorder %s25, %s26
    // Predicated region
    $region10: #{tpu_custom_call.1} parent=1 // pred_check
      %p36 = pneg %p35
    $region11: #{tpu_custom_call.1} parent=1 // pred_check_branch
      %38 = sbr.rel (%p36) target = $region13
    $region12: #{tpu_custom_call.1} parent=1 // pred_region
      %s39 = smul.u32 %s25, 24
      %s40 = scalar_lea.vmem %s4, %s39
      %v41 = vld [vmem:[%s40] sm:$0xff]
      %v42 = vld [vmem:[%s40 + $0x8] sm:$0xff]
      %v43 = vld [vmem:[%s40 + $0x10] sm:$0xff]
      %vm44 = vcmask 195584
      %v46 = vsel %vm44, %v27, 0
      %v49 = vsel %vm44, %v28, 0
      %v52 = vsel %vm44, %v29, 0
      %v55 = vsel %vm44, %v30, 0
      %v58 = vsel %vm44, %v31, 0
      %v61 = vsel %vm44, %v32, 0
      %v64 = vsel %vm44, %v33, 0
      %v67 = vsel %vm44, %v34, 0
      %69 = vmatpush.msra.mxu0 0.0
      %70 = vmatpush.msra.mxu0 0.0
      %71 = vmatpush.msra.mxu0 0.0
      %72 = vmatpush.msra.mxu0 0.0
      %73 = vmatpush.msra.mxu0 0.0
      %74 = vmatpush.msra.mxu0 0.0
      %75 = vmatpush.msra.mxu0 0.0
      %76 = vmatpush.msra.mxu0 0.0
      %77 = vmatpush.msra.mxu0 0.0
      %78 = vmatpush.msra.mxu0 0.0
      %79 = vmatpush.msra.mxu0 0.0
      %80 = vmatpush.msra.mxu0 0.0
      %81 = vmatpush.msra.mxu0 0.0
      %82 = vmatpush.msra.mxu0 %v43
      %83 = vmatpush.msra.mxu0 %v42
      %84 = vmatpush.msra.mxu0 %v41
      %85 = vmatmul.f32.gmra.mxu0 %v46
      %v86 = vpop.f32.mrf.mxu0
      %v87 = vadd.f32 0.0, %v86
      %88 = vmatmul.f32.gmra.mxu0 %v49
      %v89 = vpop.f32.mrf.mxu0
      %v90 = vadd.f32 0.0, %v89
      %91 = vmatmul.f32.gmra.mxu0 %v52
      %v92 = vpop.f32.mrf.mxu0
      %v93 = vadd.f32 0.0, %v92
      %94 = vmatmul.f32.gmra.mxu0 %v55
      %v95 = vpop.f32.mrf.mxu0
      %v96 = vadd.f32 0.0, %v95
      %97 = vmatmul.f32.gmra.mxu0 %v58
      %v98 = vpop.f32.mrf.mxu0
      %v99 = vadd.f32 0.0, %v98
      %100 = vmatmul.f32.gmra.mxu0 %v61
      %v101 = vpop.f32.mrf.mxu0
      %v102 = vadd.f32 0.0, %v101
      %103 = vmatmul.f32.gmra.mxu0 %v64
      %v104 = vpop.f32.mrf.mxu0
      %v105 = vadd.f32 0.0, %v104
      %106 = vmatmul.f32.gmra.mxu0 %v67
      %v107 = vpop.f32.mrf.mxu0
      %v108 = vadd.f32 0.0, %v107
      %109 = vdwg.mxu0
      %110 = vst [vmem:[#allocation7] sm:$0xff] %v87
      %111 = vst [vmem:[#allocation7 + $0x8] sm:$0xff] %v90
      %112 = vst [vmem:[#allocation7 + $0x10] sm:$0xff] %v93
      %113 = vst [vmem:[#allocation7 + $0x18] sm:$0xff] %v96
      %114 = vst [vmem:[#allocation7 + $0x20] sm:$0xff] %v99
      %115 = vst [vmem:[#allocation7 + $0x28] sm:$0xff] %v102
      %116 = vst [vmem:[#allocation7 + $0x30] sm:$0xff] %v105
      %117 = vst [vmem:[#allocation7 + $0x38] sm:$0xff] %v108
    $region13: #{tpu_custom_call.1} parent=1 // pred_fallthru
      _
    %p118 = scmp.ne.s32.totalorder %s25, %s26
    // Predicated region
    $region14: #{tpu_custom_call.1} parent=1 // pred_check
      %p119 = pneg %p118
    $region15: #{tpu_custom_call.1} parent=1 // pred_check_branch
      %121 = sbr.rel (%p119) target = $region17
    $region16: #{tpu_custom_call.1} parent=1 // pred_region
      %s122 = smul.u32 0, 64
      %v123 = vlaneseq
      %v124 = vshrl.u32 %v123, 7
      %v125 = vadd.s32 %v124, 8
      %v126 = vadd.s32 %v124, 16
      %v127 = vadd.s32 %v124, 24
      %v128 = vadd.s32 %v124, 32
      %v129 = vadd.s32 %v124, 40
      %v130 = vadd.s32 %v124, 48
      %v131 = vadd.s32 %v124, 56
      %v132 = vstv %s122
      %v133 = vadd.s32 %v132, %v124
      %v134 = vadd.s32 %v132, %v125
      %v135 = vadd.s32 %v132, %v126
      %v136 = vadd.s32 %v132, %v127
      %v137 = vadd.s32 %v132, %v128
      %v138 = vadd.s32 %v132, %v129
      %v139 = vadd.s32 %v132, %v130
      %v140 = vadd.s32 %v132, %v131
      %141 = vst [vmem:[#allocation2] sm:$0xff] 0.0
      %142 = vst [vmem:[#allocation2 + $0x8] sm:$0xff] 0.0
      %143 = vst [vmem:[#allocation2 + $0x10] sm:$0xff] 0.0
      %144 = vst [vmem:[#allocation2 + $0x18] sm:$0xff] 0.0
      %145 = vst [vmem:[#allocation2 + $0x20] sm:$0xff] 0.0
      %146 = vst [vmem:[#allocation2 + $0x28] sm:$0xff] 0.0
      %147 = vst [vmem:[#allocation2 + $0x30] sm:$0xff] 0.0
      %148 = vst [vmem:[#allocation2 + $0x38] sm:$0xff] 0.0
      %s149 = sadd.s32 %s26, 1
      // While loop
      $region18: #{tpu_custom_call.1} parent=16 // loop_pre_header
        _
      $region19: #{tpu_custom_call.1} parent=16 // loop_header
        %s151 = sphi %s25, %s153
        %p152 = scmp.ge.s32.totalorder %s151, %s149
      $region20: #{tpu_custom_call.1} parent=16 // loop_header_branch
        %155 = sbr.rel (%p152) target = $region24
      $region21: #{tpu_custom_call.1} parent=16 // loop_body
        %s156 = sld [smem:[#allocation6 + %s151]]
        %s157 = sadd.s32 %s151, 1
        %s158 = sld [smem:[#allocation6 + %s157]]
        %v159 = vstv %s156
        %vm160 = vcmp.ge.s32.totalorder %v133, %v159
        %vm161 = vcmp.ge.s32.totalorder %v134, %v159
        %vm162 = vcmp.ge.s32.totalorder %v135, %v159
        %vm163 = vcmp.ge.s32.totalorder %v136, %v159
        %vm164 = vcmp.ge.s32.totalorder %v137, %v159
        %vm165 = vcmp.ge.s32.totalorder %v138, %v159
        %vm166 = vcmp.ge.s32.totalorder %v139, %v159
        %vm167 = vcmp.ge.s32.totalorder %v140, %v159
        %v168 = vstv %s158
        %vm169 = vcmp.lt.s32.totalorder %v133, %v168
        %vm170 = vcmp.lt.s32.totalorder %v134, %v168
        %vm171 = vcmp.lt.s32.totalorder %v135, %v168
        %vm172 = vcmp.lt.s32.totalorder %v136, %v168
        %vm173 = vcmp.lt.s32.totalorder %v137, %v168
        %vm174 = vcmp.lt.s32.totalorder %v138, %v168
        %vm175 = vcmp.lt.s32.totalorder %v139, %v168
        %vm176 = vcmp.lt.s32.totalorder %v140, %v168
        %vm177 = vmand %vm160, %vm169
        %vm178 = vmand %vm161, %vm170
        %vm179 = vmand %vm162, %vm171
        %vm180 = vmand %vm163, %vm172
        %vm181 = vmand %vm164, %vm173
        %vm182 = vmand %vm165, %vm174
        %vm183 = vmand %vm166, %vm175
        %vm184 = vmand %vm167, %vm176
        %v185 = vsel %vm177, 1, 0
        %v186 = vsel %vm178, 1, 0
        %v187 = vsel %vm179, 1, 0
        %v188 = vsel %vm180, 1, 0
        %v189 = vsel %vm181, 1, 0
        %v190 = vsel %vm182, 1, 0
        %v191 = vsel %vm183, 1, 0
        %v192 = vsel %vm184, 1, 0
        %vm193 = vcmp.eq.s32.totalorder %v185, 1
        %vm194 = vcmp.eq.s32.totalorder %v186, 1
        %vm195 = vcmp.eq.s32.totalorder %v187, 1
        %vm196 = vcmp.eq.s32.totalorder %v188, 1
        %vm197 = vcmp.eq.s32.totalorder %v189, 1
        %vm198 = vcmp.eq.s32.totalorder %v190, 1
        %vm199 = vcmp.eq.s32.totalorder %v191, 1
        %vm200 = vcmp.eq.s32.totalorder %v192, 1
        %v201 = vsel %vm193, %v27, 0.0
        %v202 = vsel %vm194, %v28, 0.0
        %v203 = vsel %vm195, %v29, 0.0
        %v204 = vsel %vm196, %v30, 0.0
        %v205 = vsel %vm197, %v31, 0.0
        %v206 = vsel %vm198, %v32, 0.0
        %v207 = vsel %vm199, %v33, 0.0
        %v208 = vsel %vm200, %v34, 0.0
        %v209 = vld [vmem:[#allocation2] sm:$0xff]
        %v210 = vld [vmem:[#allocation2 + $0x8] sm:$0xff]
        %v211 = vld [vmem:[#allocation2 + $0x10] sm:$0xff]
        %v212 = vld [vmem:[#allocation2 + $0x18] sm:$0xff]
        %v213 = vld [vmem:[#allocation2 + $0x20] sm:$0xff]
        %v214 = vld [vmem:[#allocation2 + $0x28] sm:$0xff]
        %v215 = vld [vmem:[#allocation2 + $0x30] sm:$0xff]
        %v216 = vld [vmem:[#allocation2 + $0x38] sm:$0xff]
        %s217 = smul.u32 %s151, 24
        %s218 = scalar_lea.vmem %s4, %s217
        %v219 = vld [vmem:[%s218] sm:$0xff]
        %v220 = vld [vmem:[%s218 + $0x8] sm:$0xff]
        %v221 = vld [vmem:[%s218 + $0x10] sm:$0xff]
        %vm222 = vcmask 195584
        %v224 = vsel %vm222, %v201, 0
        %v227 = vsel %vm222, %v202, 0
        %v230 = vsel %vm222, %v203, 0
        %v233 = vsel %vm222, %v204, 0
        %v236 = vsel %vm222, %v205, 0
        %v239 = vsel %vm222, %v206, 0
        %v242 = vsel %vm222, %v207, 0
        %v245 = vsel %vm222, %v208, 0
        %247 = vmatpush.msra.mxu0 0.0
        %248 = vmatpush.msra.mxu0 0.0
        %249 = vmatpush.msra.mxu0 0.0
        %250 = vmatpush.msra.mxu0 0.0
        %251 = vmatpush.msra.mxu0 0.0
        %252 = vmatpush.msra.mxu0 0.0
        %253 = vmatpush.msra.mxu0 0.0
        %254 = vmatpush.msra.mxu0 0.0
        %255 = vmatpush.msra.mxu0 0.0
        %256 = vmatpush.msra.mxu0 0.0
        %257 = vmatpush.msra.mxu0 0.0
        %258 = vmatpush.msra.mxu0 0.0
        %259 = vmatpush.msra.mxu0 0.0
        %260 = vmatpush.msra.mxu0 %v221
        %261 = vmatpush.msra.mxu0 %v220
        %262 = vmatpush.msra.mxu0 %v219
        %263 = vmatmul.f32.gmra.mxu0 %v224
        %v264 = vpop.f32.mrf.mxu0
        %v265 = vadd.f32 0.0, %v264
        %266 = vmatmul.f32.gmra.mxu0 %v227
        %v267 = vpop.f32.mrf.mxu0
        %v268 = vadd.f32 0.0, %v267
        %269 = vmatmul.f32.gmra.mxu0 %v230
        %v270 = vpop.f32.mrf.mxu0
        %v271 = vadd.f32 0.0, %v270
        %272 = vmatmul.f32.gmra.mxu0 %v233
        %v273 = vpop.f32.mrf.mxu0
        %v274 = vadd.f32 0.0, %v273
        %275 = vmatmul.f32.gmra.mxu0 %v236
        %v276 = vpop.f32.mrf.mxu0
        %v277 = vadd.f32 0.0, %v276
        %278 = vmatmul.f32.gmra.mxu0 %v239
        %v279 = vpop.f32.mrf.mxu0
        %v280 = vadd.f32 0.0, %v279
        %281 = vmatmul.f32.gmra.mxu0 %v242
        %v282 = vpop.f32.mrf.mxu0
        %v283 = vadd.f32 0.0, %v282
        %284 = vmatmul.f32.gmra.mxu0 %v245
        %v285 = vpop.f32.mrf.mxu0
        %v286 = vadd.f32 0.0, %v285
        %287 = vdwg.mxu0
        %v288 = vadd.f32 %v209, %v265
        %v289 = vadd.f32 %v210, %v268
        %v290 = vadd.f32 %v211, %v271
        %v291 = vadd.f32 %v212, %v274
        %v292 = vadd.f32 %v213, %v277
        %v293 = vadd.f32 %v214, %v280
        %v294 = vadd.f32 %v215, %v283
        %v295 = vadd.f32 %v216, %v286
        %296 = vst [vmem:[#allocation2] sm:$0xff] %v288
        %297 = vst [vmem:[#allocation2 + $0x8] sm:$0xff] %v289
        %298 = vst [vmem:[#allocation2 + $0x10] sm:$0xff] %v290
        %299 = vst [vmem:[#allocation2 + $0x18] sm:$0xff] %v291
        %300 = vst [vmem:[#allocation2 + $0x20] sm:$0xff] %v292
        %301 = vst [vmem:[#allocation2 + $0x28] sm:$0xff] %v293
        %302 = vst [vmem:[#allocation2 + $0x30] sm:$0xff] %v294
        %303 = vst [vmem:[#allocation2 + $0x38] sm:$0xff] %v295
      $region22: #{tpu_custom_call.1} parent=16 // loop_footer
        %s153 = sadd.s32 %s151, 1
      $region23: #{tpu_custom_call.1} parent=16 // loop_footer_branch
        %150 = sbr.rel target = $region19
      $region24: #{tpu_custom_call.1} parent=16 // loop_exit
        _
      %v304 = vld [vmem:[#allocation2] sm:$0xff]
      %v305 = vld [vmem:[#allocation2 + $0x8] sm:$0xff]
      %v306 = vld [vmem:[#allocation2 + $0x10] sm:$0xff]
      %v307 = vld [vmem:[#allocation2 + $0x18] sm:$0xff]
      %v308 = vld [vmem:[#allocation2 + $0x20] sm:$0xff]
      %v309 = vld [vmem:[#allocation2 + $0x28] sm:$0xff]
      %v310 = vld [vmem:[#allocation2 + $0x30] sm:$0xff]
      %v311 = vld [vmem:[#allocation2 + $0x38] sm:$0xff]
      %312 = vst [vmem:[#allocation7] sm:$0xff] %v304
      %313 = vst [vmem:[#allocation7 + $0x8] sm:$0xff] %v305
      %314 = vst [vmem:[#allocation7 + $0x10] sm:$0xff] %v306
      %315 = vst [vmem:[#allocation7 + $0x18] sm:$0xff] %v307
      %316 = vst [vmem:[#allocation7 + $0x20] sm:$0xff] %v308
      %317 = vst [vmem:[#allocation7 + $0x28] sm:$0xff] %v309
      %318 = vst [vmem:[#allocation7 + $0x30] sm:$0xff] %v310
      %319 = vst [vmem:[#allocation7 + $0x38] sm:$0xff] %v311
    $region17: #{tpu_custom_call.1} parent=1 // pred_fallthru
      _
    // Predicated region
    $region25: #{tpu_custom_call.1} parent=1 // pred_check
      _
    $region26: #{tpu_custom_call.1} parent=1 // pred_check_branch
      %321 = sbr.rel (0) target = $region28
    $region27: #{tpu_custom_call.1} parent=1 // pred_region
      %323 = vsyncadd [#allocation8], 0
      %s324 = sshll.u32 [#allocation7], 4
      %s325 = int_to_ptr.vmem [resolvable:$true] %s324
      %s326 = sshll.u32 %s5, 4
      %s327 = int_to_ptr.hbm [resolvable:$true] %s326
      %332 = dma.vmem_to_hbm [thread:$0]  %s325, 1024, %s327, [#allocation8], 128, 128, 8
    $region28: #{tpu_custom_call.1} parent=1 // pred_fallthru
      _
    // Predicated region
    $region29: #{tpu_custom_call.1} parent=1 // pred_check
      _
    $region30: #{tpu_custom_call.1} parent=1 // pred_check_branch
      %334 = sbr.rel (0) target = $region32
    $region31: #{tpu_custom_call.1} parent=1 // pred_region
      %336 = dma.done [#allocation8], 1024
    $region32: #{tpu_custom_call.1} parent=1 // pred_fallthru
      _
    %337 = vsyncpa [#allocation8], 1

</llo_original>
